<compile_context>
chip_gen: v7x
topology: tpu7x:2x2x1
jax: 0.10.0
libtpu: 0.0.40
codegen_flags: <defaults>
</compile_context>

<pallas_src>
import jax
import jax.numpy as jnp
from jax.experimental import pallas as pl
from jax.experimental.pallas import tpu as pltpu

_LANES = 128  # TPU vreg lane width; keep the last dim dense on lanes.


def _sublane_multiple(dtype) -> int:
    """Packed min-tile rows: 8 for 32-bit, 16 for 16-bit, 32 for 8-bit dtypes."""
    itemsize = jnp.dtype(dtype).itemsize
    if itemsize >= 4:
        return 8
    if itemsize == 2:
        return 16
    return 32


def _abs_kernel(x_ref, o_ref):
    # Whole-tile elementwise abs; VPU-only, no cross-lane traffic, no scratch.
    o_ref[...] = jnp.abs(x_ref[...])


def pallas_abs(x, *, block_rows=8192, use_xla_for_small=True, donate_input=False):
    """Elementwise |x| via Pallas. Accepts any shape; returns same shape/dtype."""
    orig_shape = x.shape
    n = x.size
    if n == 0:
        return x
    itemsize = jnp.dtype(x.dtype).itemsize

    # Tiny tensors: fixed pallas_call + DMA setup dominates; fused XLA abs wins.
    if use_xla_for_small and n * itemsize < (64 << 10):
        return jnp.abs(x)

    sub = _sublane_multiple(x.dtype)

    # ---- Lane-dense 2D presentation: (rows, 128) --------------------------
    # Pad ONLY to a lane multiple, and only when needed (n % 128 != 0). The
    # common NCHW case needs no pad -> no extra HBM passes in the wrapper.
    pad = (-n) % _LANES
    flat = x.reshape(-1)
    if pad:
        flat = jnp.pad(flat, (0, pad))
    rows = (n + pad) // _LANES
    x2d = flat.reshape(rows, _LANES)

    # ---- Block-row choice --------------------------------------------------
    #  * large inputs: big blocks (~2-4 MiB/buffer for f32) amortize the
    #    ~0.35 us per-step overhead; multiple of the dtype-packed sublane tile;
    #    ragged last block is fine (Pallas masks edge stores).
    #  * medium inputs that would fit a single block: split into 2 so the
    #    "parallel" row axis can shard across v7x's 2 TensorCores.
    #  * small inputs: one block equal to the full dim (always a legal shape).
    if rows > block_rows:
        br = max(sub, (block_rows // sub) * sub)
    elif rows >= 2 * sub and rows * _LANES * itemsize > (1 << 20):
        br = ((pl.cdiv(rows, 2) + sub - 1) // sub) * sub
    else:
        br = rows

    grid = (pl.cdiv(rows, br),)
    idx_map = lambda i: (i, 0)

    # Explicit VMEM budget: (in + out) x double-buffered blocks + headroom.
    # Keeps the larger blocks legal on v5e's 16 MiB default scoped limit and
    # stays well under v7x's 64 MiB physical VMEM.
    block_bytes = br * _LANES * itemsize
    vmem_limit = int(min(4 * block_bytes + (2 << 20), 48 << 20))

    out2d = pl.pallas_call(
        _abs_kernel,
        out_shape=jax.ShapeDtypeStruct((rows, _LANES), x.dtype),
        grid=grid,
        in_specs=[pl.BlockSpec((br, _LANES), idx_map)],
        out_specs=pl.BlockSpec((br, _LANES), idx_map),
        compiler_params=pltpu.CompilerParams(
            # Row tiles are independent -> shard across TensorCores on v7x
            # (no-op on single-TC v5e/v6e).
            dimension_semantics=("parallel",),
            vmem_limit_bytes=vmem_limit,
        ),
        # Optional: alias output onto the input buffer (callers that reuse x
        # afterwards should leave this False).
        input_output_aliases=({0: 0} if donate_input else {}),
    )(x2d)

    out_flat = out2d.reshape(-1)
    if pad:
        out_flat = out_flat[:n]
    return out_flat.reshape(orig_shape)


def _abs_ref(x):
    return jnp.abs(x)


if __name__ == "__main__":
    key = jax.random.PRNGKey(0)

    # Primary test: small NCHW shape consistent with the ResNet-context module.
    # use_xla_for_small=False so the Pallas kernel itself is exercised.
    x = jax.random.normal(key, (2, 4, 16, 16), dtype=jnp.float32)
    out = jax.block_until_ready(pallas_abs(x, use_xla_for_small=False))
    ref = _abs_ref(x)
    assert out.shape == x.shape, out.shape
    assert out.dtype == x.dtype, out.dtype
    assert jnp.array_equal(out, ref), "mismatch vs reference (aligned case)"

    # Ragged case: n % 128 != 0 exercises the pad/slice fallback path.
    k1, k2 = jax.random.split(key)
    x_ragged = jax.random.normal(k1, (3, 5, 7, 11), dtype=jnp.float32)
    out_r = jax.block_until_ready(pallas_abs(x_ragged, use_xla_for_small=False))
    assert jnp.array_equal(out_r, _abs_ref(x_ragged)), "mismatch (ragged case)"

    # Medium case: exercises the 2-block (megacore-shardable) path.
    x_med = jax.random.normal(k2, (16, 32, 32, 32), dtype=jnp.float32)
    out_m = jax.block_until_ready(pallas_abs(x_med, use_xla_for_small=False))
    assert jnp.array_equal(out_m, _abs_ref(x_med)), "mismatch (medium case)"

    print("KERNEL_OK")
</pallas_src>

<mosaic_0001>
module attributes {stable_mosaic.version = 11 : i64} {
  func.func @_abs_kernel(%arg0: i32, %arg1: memref<16x128xf32, #tpu.memory_space<vmem>>, %arg2: memref<16x128xf32, #tpu.memory_space<vmem>>) attributes {dimension_semantics = [#tpu.dimension_semantics<parallel>], iteration_bounds = array<i64: 1>, scalar_prefetch = 0 : i64, scratch_operands = 0 : i64, tpu.core_type = #tpu.core_type<tc>, window_params = [{transform_indices = @transform_0, window_bounds = array<i64: 16, 128>}, {transform_indices = @transform_1, window_bounds = array<i64: 16, 128>}]} {
    %c0 = arith.constant 0 : index
    %c0_0 = arith.constant 0 : index
    %0 = vector.load %arg1[%c0, %c0_0] : memref<16x128xf32, #tpu.memory_space<vmem>>, vector<16x128xf32>
    %1 = math.absf %0 : vector<16x128xf32>
    %c0_1 = arith.constant 0 : index
    %c0_2 = arith.constant 0 : index
    %2 = vector.load %arg2[%c0_1, %c0_2] : memref<16x128xf32, #tpu.memory_space<vmem>>, vector<16x128xf32>
    tpu.vector_store %arg2[%c0_1, %c0_2], %1 {strides = array<i32>} : memref<16x128xf32, #tpu.memory_space<vmem>>, vector<16x128xf32>,
    return
  }
  func.func @transform_0(%arg0: i32) -> (i32, i32) {
    %c0_i32 = arith.constant 0 : i32
    %c0_i32_0 = arith.constant 0 : i32
    return %arg0, %c0_i32 : i32, i32
  }
  func.func @transform_1(%arg0: i32) -> (i32, i32) {
    %c0_i32 = arith.constant 0 : i32
    %c0_i32_0 = arith.constant 0 : i32
    return %arg0, %c0_i32 : i32, i32
  }
}

</mosaic_0001>

<llo_original>
// kernel: tpu_custom_call.1
$region0: #{tpu_custom_call.1}
  #allocation0 [shape = 'u32[]', space=smem, size = 0x4, offset = 0x4, fixed_abs, tag = 'smem constant byte address 0x4 - core index']
  #allocation1 [shape = 'u32[144,128]{1,0:T(1,128)}', space=vmem, size = 0x12000, scoped, tag = 'internal scratch']
  %s0 = inlined_call_operand.hbm [shape: f32[16,128], index: 0, kind: input, shape index: {}]
  %s1 = inlined_call_operand.hbm [shape: f32[16,128], index: 1, kind: output, shape index: {}]
  %s2 = sld [smem:[#allocation0]]
  $region18: #{tpu_custom_call.1} parent=0
    _
  %s4 = ssub.s32 1, %s2
  %s5 = scalar_select 0, %s4, %s2
  $region1: #{tpu_custom_call.1} parent=0
    #allocation2 [shape = 'u8[8192]{0}', space=vmem, size = 0x2000, scoped, tag = 'input window, operand 0, single buffered']
    #allocation3 [shape = 's32[1]{0}', space=sflag, size = 0x4, scoped, tag = 'scoped memory for tpu_custom_call.1']
    #allocation4 [shape = 's32[1]{0}', space=sflag, size = 0x4, scoped, tag = 'scoped memory for tpu_custom_call.1']
    #allocation5 [shape = 'u8[8192]{0}', space=vmem, size = 0x2000, scoped, tag = 'output window, operand 0, single buffered']
    %6 = vsyncpa [#allocation3], 0
    %7 = vsyncpa [#allocation4], 0
    // Predicated region
    $region2: #{tpu_custom_call.1} parent=1 // pred_check
      _
    $region3: #{tpu_custom_call.1} parent=1 // pred_check_branch
      %9 = sbr.rel (0) target = $region5
    $region4: #{tpu_custom_call.1} parent=1 // pred_region
      %s11 = ssub.s32 256, 256
      %12 = vsyncadd [#allocation3], %s11
      %s13 = sshll.u32 [#allocation2], 4
      %s14 = int_to_ptr.vmem [resolvable:$true] %s13
      %19 = dma.hbm_to_vmem [thread:$0]  %s0, 256, %s14, [#allocation3], 128, 128, 8
    $region5: #{tpu_custom_call.1} parent=1 // pred_fallthru
      _
    // Predicated region
    $region6: #{tpu_custom_call.1} parent=1 // pred_check
      _
    $region7: #{tpu_custom_call.1} parent=1 // pred_check_branch
      %21 = sbr.rel (0) target = $region9
    $region8: #{tpu_custom_call.1} parent=1 // pred_region
      %22 = dma.done [#allocation3], 256
    $region9: #{tpu_custom_call.1} parent=1 // pred_fallthru
      _
    %v23 = vld [vmem:[#allocation2] sm:$0xff]
    %v24 = vld [vmem:[#allocation2 + $0x8] sm:$0xff]
    %v25 = vand.u32 2147483647, %v23
    %v26 = vand.u32 2147483647, %v24
    %27 = vst [vmem:[#allocation5] sm:$0xff] %v25
    %28 = vst [vmem:[#allocation5 + $0x8] sm:$0xff] %v26
    // Predicated region
    $region10: #{tpu_custom_call.1} parent=1 // pred_check
      _
    $region11: #{tpu_custom_call.1} parent=1 // pred_check_branch
      %30 = sbr.rel (0) target = $region13
    $region12: #{tpu_custom_call.1} parent=1 // pred_region
      %s32 = ssub.s32 256, 256
      %33 = vsyncadd [#allocation4], %s32
      %s34 = sshll.u32 [#allocation5], 4
      %s35 = int_to_ptr.vmem [resolvable:$true] %s34
      %40 = dma.vmem_to_hbm [thread:$0]  %s35, 256, %s1, [#allocation4], 128, 128, 8
    $region13: #{tpu_custom_call.1} parent=1 // pred_fallthru
      _
    // Predicated region
    $region14: #{tpu_custom_call.1} parent=1 // pred_check
      _
    $region15: #{tpu_custom_call.1} parent=1 // pred_check_branch
      %42 = sbr.rel (0) target = $region17
    $region16: #{tpu_custom_call.1} parent=1 // pred_region
      %43 = dma.done [#allocation4], 256
    $region17: #{tpu_custom_call.1} parent=1 // pred_fallthru
      _
    %44 = vsyncpa [#allocation3], 1
    %45 = vsyncpa [#allocation4], 1

</llo_original>
